<compile_context>
chip_gen: v6e
topology: v6e:2x2x1
jax: 0.10.0
libtpu: 0.0.40
codegen_flags: <defaults>
</compile_context>

<pallas_src>
import functools

import jax
import jax.numpy as jnp
from jax.experimental import pallas as pl
from jax.experimental.pallas import tpu as pltpu


def _round_up(a, b):
    return ((a + b - 1) // b) * b


def init_params(key, num_inputs, num_outputs, h1, h2):
    """Deterministic synthetic parameters, PyTorch-shaped."""
    ks = jax.random.split(key, 12)
    u = lambda k, shape, fan_in: jax.random.uniform(
        k, shape, jnp.float32, -1.0 / jnp.sqrt(fan_in), 1.0 / jnp.sqrt(fan_in))
    return {
        # actor
        "cw_a": u(ks[0], (1, 2, 1), 2.0),        # Conv1d weight (out_c, in_c, k)
        "cb_a": u(ks[1], (1,), 2.0),             # Conv1d bias
        "w1a": u(ks[2], (h1, num_inputs), float(num_inputs)),
        "w2a": u(ks[3], (h2, h1), float(h1)),
        "w3a": u(ks[4], (num_outputs, h2), float(h2)),
        "b3a": u(ks[5], (num_outputs,), float(h2)),
        # critic
        "cw_c": u(ks[6], (1, 2, 1), 2.0),
        "cb_c": u(ks[7], (1,), 2.0),
        "w1c": u(ks[8], (h1, num_inputs), float(num_inputs)),
        "w2c": u(ks[9], (h2, h1), float(h1)),
        "w3c": u(ks[10], (1, h2), float(h2)),
        "b3c": u(ks[11], (1,), float(h2)),
    }


def pack_a2c_params(params):
    """Fold the Conv1d into W1, fuse actor+critic block-wise, pad lane-dense,
    and stack everything into ONE bf16 VMEM slab.  Done once, not per call."""
    h1, n = params["w1a"].shape
    h2 = params["w2a"].shape[0]
    no = params["w3a"].shape[0]

    kp = _round_up(2 * n + 1, 128)                     # LHS lanes / W1 rows
    lanes = max(_round_up(2 * h1, 128),
                _round_up(2 * h2, 128),
                _round_up(no + 1, 128))                # common RHS lane width
    # NOTE: if hidden sizes ever grow (2*h up to 256) let `lanes` grow to 256
    # rather than splitting into two 128-lane slabs (fills the v6e/v7x MXU).

    f32 = jnp.float32
    w1a_t = params["w1a"].T.astype(f32)                # (n, h1)
    w1c_t = params["w1c"].T.astype(f32)
    w2a_t = params["w2a"].T.astype(f32)                # (h1, h2)
    w2c_t = params["w2c"].T.astype(f32)
    w3a_t = params["w3a"].T.astype(f32)                # (h2, no)
    w3c_t = params["w3c"].T.astype(f32)                # (h2, 1)
    cwa = params["cw_a"].reshape(2).astype(f32)
    cba = params["cb_a"].reshape(()).astype(f32)
    cwc = params["cw_c"].reshape(2).astype(f32)
    cbc = params["cb_c"].reshape(()).astype(f32)

    # W1 with the Conv1d(2,1,1) folded in.  LHS row = [x_ch0 | x_ch1 | 1 | 0..]
    #   h0 = cw0*x0 + cw1*x1 + cb  =>  h0 @ W1 = x0@(cw0*W1) + x1@(cw1*W1) + cb*colsum(W1)
    w1 = jnp.zeros((kp, lanes), f32)
    w1 = w1.at[0:n, 0:h1].set(cwa[0] * w1a_t)
    w1 = w1.at[n:2 * n, 0:h1].set(cwa[1] * w1a_t)
    w1 = w1.at[2 * n, 0:h1].set(cba * jnp.sum(w1a_t, axis=0))
    w1 = w1.at[0:n, h1:2 * h1].set(cwc[0] * w1c_t)
    w1 = w1.at[n:2 * n, h1:2 * h1].set(cwc[1] * w1c_t)
    w1 = w1.at[2 * n, h1:2 * h1].set(cbc * jnp.sum(w1c_t, axis=0))

    # Block-diagonal W2 (actor block, critic block).
    w2 = jnp.zeros((lanes, lanes), f32)
    w2 = w2.at[0:h1, 0:h2].set(w2a_t)
    w2 = w2.at[h1:2 * h1, h2:2 * h2].set(w2c_t)

    # W3: actor columns 0..no-1, critic column no.
    w3 = jnp.zeros((lanes, lanes), f32)
    w3 = w3.at[0:h2, 0:no].set(w3a_t)
    w3 = w3.at[h2:2 * h2, no:no + 1].set(w3c_t)

    # Bias row, padded to 16 sublanes (bf16 packing) so the slab stays aligned.
    b3 = jnp.zeros((16, lanes), f32)
    b3 = b3.at[0, 0:no].set(params["b3a"].astype(f32))
    b3 = b3.at[0, no].set(params["b3c"].reshape(()).astype(f32))

    slab = jnp.concatenate([w1, w2, w3, b3], axis=0)   # (kp + 2*lanes + 16, lanes)
    slab = slab.astype(jnp.bfloat16)                   # one rounding, at pack time
    n_rows = kp + 2 * lanes + 16
    return slab, (n, h1, h2, no, kp, lanes, n_rows)


def make_a2c_forward(params, batch_tile=128):
    """Pack weights once; return (forward, forward_batch).

    forward(x)            -> (probs (no,), value (1,))   [PyTorch forward semantics]
    forward_batch(xs)     -> (probs (B,no), value (B,1)) [batched perf path]
    """
    slab, (n, h1, h2, no, kp, lanes, n_rows) = pack_a2c_params(params)
    TB = batch_tile  # batch tile per grid step; multiple of 16 (bf16 sublanes)
    assert TB % 16 == 0

    def kernel(x_ref, w_ref, out_ref):
        x = x_ref[...]                                       # (tb, kp) bf16
        # Loads are placed right before each (dependent) dot so the scheduler
        # hides them under the previous matmul and vreg pressure stays low.
        w1 = w_ref[0:kp, :]                                  # (kp, lanes) bf16
        a1 = jnp.dot(x, w1, preferred_element_type=jnp.float32)
        a1 = jnp.maximum(a1, 0.0).astype(jnp.bfloat16)       # ReLU in f32, feed MXU bf16
        w2 = w_ref[kp:kp + lanes, :]                         # (lanes, lanes) bf16
        a2 = jnp.dot(a1, w2, preferred_element_type=jnp.float32)
        a2 = jnp.maximum(a2, 0.0).astype(jnp.bfloat16)
        w3 = w_ref[kp + lanes:kp + 2 * lanes, :]             # (lanes, lanes) bf16
        b3 = w_ref[pl.ds(kp + 2 * lanes, 1), :].astype(jnp.float32)   # (1, lanes)
        out_ref[...] = jnp.dot(a2, w3, preferred_element_type=jnp.float32) + b3

    def _call(lhs, slab_arg, tb):
        bp = lhs.shape[0]
        grid_spec = pltpu.PrefetchScalarGridSpec(
            num_scalar_prefetch=0,
            grid=(bp // tb,),
            in_specs=[
                pl.BlockSpec((tb, kp), lambda i: (i, 0)),        # LHS tiles stream
                pl.BlockSpec((n_rows, lanes), lambda i: (0, 0)),  # slab stays resident
            ],
            out_specs=pl.BlockSpec((tb, lanes), lambda i: (i, 0)),
        )
        return pl.pallas_call(
            kernel,
            out_shape=jax.ShapeDtypeStruct((bp, lanes), jnp.float32),
            grid_spec=grid_spec,
            compiler_params=pltpu.CompilerParams(
                dimension_semantics=("parallel",),   # shard batch tiles over v7x TCs
                vmem_limit_bytes=16 * 1024 * 1024),  # ample headroom for this tiny kernel
            cost_estimate=pl.CostEstimate(
                flops=2 * bp * (kp + 2 * lanes) * lanes,
                transcendentals=0,
                bytes_accessed=2 * bp * kp + 2 * n_rows * lanes + 4 * bp * lanes),
        )(lhs, slab_arg)

    @jax.jit
    def _forward_batch(xs, slab_arg):
        # xs: (B, ...) where each state has 2*n elements (torch reshape (-1,2,1)).
        b = xs.shape[0]
        xs2 = jnp.reshape(xs.astype(jnp.float32), (b, n, 2))
        # One fused concat builds the lane-dense LHS: [x_ch0 | x_ch1 | 1 | 0...].
        lhs = jnp.concatenate(
            [xs2[:, :, 0], xs2[:, :, 1],
             jnp.ones((b, 1), jnp.float32),
             jnp.zeros((b, kp - 2 * n - 1), jnp.float32)],
            axis=1).astype(jnp.bfloat16)
        tb = TB if b >= TB else _round_up(max(b, 16), 16)
        bp = _round_up(b, tb)
        if bp != b:
            lhs = jnp.concatenate(
                [lhs, jnp.zeros((bp - b, kp), jnp.bfloat16)], axis=0)
        out = _call(lhs, slab_arg, tb)                       # (bp, lanes) f32
        return out[:b, 0:no], out[:b, no:no + 1]

    forward_batch = functools.partial(_forward_batch, slab_arg=slab)

    def forward(x):
        """Single-state forward, matching the PyTorch module's forward()."""
        probs, value = forward_batch(jnp.reshape(x, (1, -1)))
        return probs[0], value[0]

    return forward, forward_batch


def a2c_reference(x, params):
    """Pure-JAX f32 reference mirroring the PyTorch forward."""
    xr = jnp.reshape(x.astype(jnp.float32), (-1, 2))          # (n, 2)

    def head(cw, cb, w1, w2, w3, b3):
        h0 = xr @ cw.reshape(2, 1) + cb                       # (n, 1) conv1d k=1
        v = h0.reshape(-1)                                    # Flatten(start_dim=0)
        v = jnp.maximum(w1 @ v, 0.0)
        v = jnp.maximum(w2 @ v, 0.0)
        return w3 @ v + b3

    probs = head(params["cw_a"], params["cb_a"], params["w1a"],
                 params["w2a"], params["w3a"], params["b3a"])
    value = head(params["cw_c"], params["cb_c"], params["w1c"],
                 params["w2c"], params["w3c"], params["b3c"])
    return probs, value


if __name__ == "__main__":
    num_inputs, num_outputs = 16, 8
    hidden1, hidden2 = 32, 32

    key = jax.random.PRNGKey(0)
    k_x, k_b, k_p = jax.random.split(key, 3)
    params = init_params(k_p, num_inputs, num_outputs, hidden1, hidden2)

    forward, forward_batch = make_a2c_forward(params, batch_tile=128)

    # --- single-state path (exact PyTorch forward semantics) ---
    x = jax.random.normal(k_x, (num_inputs, 2), dtype=jnp.float32)
    probs, value = forward(x)
    jax.block_until_ready((probs, value))
    ref_p, ref_v = a2c_reference(x, params)
    assert probs.shape == (num_outputs,) and value.shape == (1,)
    # bf16 weights/activations (f32 accumulation) -> slightly looser tolerance.
    assert jnp.allclose(probs, ref_p, atol=5e-2, rtol=5e-2)
    assert jnp.allclose(value, ref_v, atol=5e-2, rtol=5e-2)

    # --- batched path (the performance path: 256 env states per call) ---
    B = 256
    xs = jax.random.normal(k_b, (B, 2 * num_inputs), dtype=jnp.float32)
    bp, bv = forward_batch(xs)
    jax.block_until_ready((bp, bv))
    ref_bp, ref_bv = jax.vmap(lambda xi: a2c_reference(xi, params))(xs)
    assert bp.shape == (B, num_outputs) and bv.shape == (B, 1)
    assert jnp.allclose(bp, ref_bp, atol=5e-2, rtol=5e-2)
    assert jnp.allclose(bv, ref_bv, atol=5e-2, rtol=5e-2)

    print("KERNEL_OK")
</pallas_src>

<mosaic_0001>
module attributes {stable_mosaic.version = 11 : i64} {
  func.func @kernel(%arg0: i32, %arg1: memref<16x128xbf16, #tpu.memory_space<vmem>>, %arg2: memref<400x128xbf16, #tpu.memory_space<vmem>>, %arg3: memref<16x128xf32, #tpu.memory_space<vmem>>) attributes {dimension_semantics = [#tpu.dimension_semantics<parallel>], iteration_bounds = array<i64: 1>, scalar_prefetch = 0 : i64, scratch_operands = 0 : i64, tpu.core_type = #tpu.core_type<tc>, window_params = [{transform_indices = @transform_0, window_bounds = array<i64: 16, 128>}, {pipeline_mode = #tpu.pipeline_mode<synchronous>, transform_indices = @transform_1, window_bounds = array<i64: 400, 128>}, {transform_indices = @transform_2, window_bounds = array<i64: 16, 128>}]} {
    %c0 = arith.constant 0 : index
    %c0_0 = arith.constant 0 : index
    %0 = vector.load %arg1[%c0, %c0_0] : memref<16x128xbf16, #tpu.memory_space<vmem>>, vector<16x128xbf16>
    %c0_1 = arith.constant 0 : index
    %c0_2 = arith.constant 0 : index
    %1 = vector.load %arg2[%c0_1, %c0_2] : memref<400x128xbf16, #tpu.memory_space<vmem>>, vector<128x128xbf16>
    %cst = arith.constant dense<0.000000e+00> : vector<16x128xf32>
    %2 = tpu.matmul %0, %1, %cst {dimension_numbers = #tpu.dot_dimension_numbers<[1], [0], [0], [1], [0, 0, 1, 1], [], []>} : vector<16x128xbf16>, vector<128x128xbf16>, vector<16x128xf32> -> vector<16x128xf32>
    %cst_3 = arith.constant 0.000000e+00 : f32
    %3 = vector.broadcast %cst_3 : f32 to vector<16x128xf32>
    %4 = arith.maximumf %2, %3 : vector<16x128xf32>
    %5 = arith.truncf %4 : vector<16x128xf32> to vector<16x128xbf16>
    %c128 = arith.constant 128 : index
    %c0_4 = arith.constant 0 : index
    %6 = vector.load %arg2[%c128, %c0_4] : memref<400x128xbf16, #tpu.memory_space<vmem>>, vector<128x128xbf16>
    %cst_5 = arith.constant dense<0.000000e+00> : vector<16x128xf32>
    %7 = tpu.matmul %5, %6, %cst_5 {dimension_numbers = #tpu.dot_dimension_numbers<[1], [0], [0], [1], [0, 0, 1, 1], [], []>} : vector<16x128xbf16>, vector<128x128xbf16>, vector<16x128xf32> -> vector<16x128xf32>
    %cst_6 = arith.constant 0.000000e+00 : f32
    %8 = vector.broadcast %cst_6 : f32 to vector<16x128xf32>
    %9 = arith.maximumf %7, %8 : vector<16x128xf32>
    %10 = arith.truncf %9 : vector<16x128xf32> to vector<16x128xbf16>
    %c256 = arith.constant 256 : index
    %c0_7 = arith.constant 0 : index
    %11 = vector.load %arg2[%c256, %c0_7] : memref<400x128xbf16, #tpu.memory_space<vmem>>, vector<128x128xbf16>
    %c384 = arith.constant 384 : index
    %c0_8 = arith.constant 0 : index
    %12 = vector.load %arg2[%c384, %c0_8] : memref<400x128xbf16, #tpu.memory_space<vmem>>, vector<1x128xbf16>
    %13 = arith.extf %12 : vector<1x128xbf16> to vector<1x128xf32>
    %cst_9 = arith.constant dense<0.000000e+00> : vector<16x128xf32>
    %14 = tpu.matmul %10, %11, %cst_9 {dimension_numbers = #tpu.dot_dimension_numbers<[1], [0], [0], [1], [0, 0, 1, 1], [], []>} : vector<16x128xbf16>, vector<128x128xbf16>, vector<16x128xf32> -> vector<16x128xf32>
    %15 = vector.broadcast %13 : vector<1x128xf32> to vector<16x128xf32>
    %16 = arith.addf %14, %15 : vector<16x128xf32>
    %c0_10 = arith.constant 0 : index
    %c0_11 = arith.constant 0 : index
    %17 = vector.load %arg3[%c0_10, %c0_11] : memref<16x128xf32, #tpu.memory_space<vmem>>, vector<16x128xf32>
    tpu.vector_store %arg3[%c0_10, %c0_11], %16 {strides = array<i32>} : memref<16x128xf32, #tpu.memory_space<vmem>>, vector<16x128xf32>,
    return
  }
  func.func @transform_0(%arg0: i32) -> (i32, i32) {
    %c0_i32 = arith.constant 0 : i32
    %c0_i32_0 = arith.constant 0 : i32
    return %arg0, %c0_i32 : i32, i32
  }
  func.func @transform_1(%arg0: i32) -> (i32, i32) {
    %c0_i32 = arith.constant 0 : i32
    %c0_i32_0 = arith.constant 0 : i32
    %c0_i32_1 = arith.constant 0 : i32
    return %c0_i32, %c0_i32_0 : i32, i32
  }
  func.func @transform_2(%arg0: i32) -> (i32, i32) {
    %c0_i32 = arith.constant 0 : i32
    %c0_i32_0 = arith.constant 0 : i32
    return %arg0, %c0_i32 : i32, i32
  }
}

</mosaic_0001>

<llo_original>
// kernel: _forward_batch.1
$region0: #{_forward_batch.1}
  #allocation0 [shape = 'u32[]', space=smem, size = 0x4, offset = 0x4, fixed_abs, tag = 'smem constant byte address 0x4 - core index']
  #allocation1 [shape = 'u32[144,128]{1,0:T(1,128)}', space=vmem, size = 0x12000, scoped, tag = 'internal scratch']
  %s0 = inlined_call_operand.vmem [shape: bf16[16,128], index: 0, kind: input, shape index: {}]
  %s1 = inlined_call_operand.hbm [shape: bf16[400,128], index: 1, kind: input, shape index: {}]
  %s2 = inlined_call_operand.vmem [shape: f32[16,128], index: 2, kind: output, shape index: {}]
  %s3 = sld [smem:[#allocation0]]
  $region22: #{_forward_batch.1} parent=0
    _
  %s5 = ssub.s32 1, %s3
  %s6 = scalar_select 0, %s5, %s3
  $region1: #{_forward_batch.1} parent=0
    #allocation2 [shape = 'u8[102400]{0}', space=vmem, size = 0x19000, scoped, tag = 'input window, operand 1, single buffered']
    #allocation3 [shape = 's32[1]{0}', space=sflag, size = 0x4, scoped, tag = 'scoped memory for _forward_batch.1']
    %7 = vsyncpa [#allocation3], 0
    // Predicated region
    $region2: #{_forward_batch.1} parent=1 // pred_check
      _
    $region3: #{_forward_batch.1} parent=1 // pred_check_branch
      %9 = sbr.rel (0) target = $region5
    $region4: #{_forward_batch.1} parent=1 // pred_region
      _
    $region5: #{_forward_batch.1} parent=1 // pred_fallthru
      _
    // Predicated region
    $region6: #{_forward_batch.1} parent=1 // pred_check
      _
    $region7: #{_forward_batch.1} parent=1 // pred_check_branch
      %11 = sbr.rel (0) target = $region9
    $region8: #{_forward_batch.1} parent=1 // pred_region
      %s13 = ssub.s32 3200, 3200
      %14 = vsyncadd [#allocation3], %s13
      %s15 = sshll.u32 [#allocation2], 4
      %s16 = int_to_ptr.vmem [resolvable:$true] %s15
      %21 = dma.hbm_to_vmem [thread:$0]  %s1, 3200, %s16, [#allocation3], 64, 64, 4
    $region9: #{_forward_batch.1} parent=1 // pred_fallthru
      _
    // Predicated region
    $region10: #{_forward_batch.1} parent=1 // pred_check
      _
    $region11: #{_forward_batch.1} parent=1 // pred_check_branch
      %23 = sbr.rel (0) target = $region13
    $region12: #{_forward_batch.1} parent=1 // pred_region
      %24 = dma.done [#allocation3], 3200
    $region13: #{_forward_batch.1} parent=1 // pred_fallthru
      _
    %v26 = vld [vmem:[%s0] sm:$0xf]
    %v27 = vld [vmem:[%s0 + $0x4] sm:$0xf]
    %v28 = vld [vmem:[#allocation2] sm:$0xf]
    %v29 = vld [vmem:[#allocation2 + $0x4] sm:$0xf]
    %v30 = vld [vmem:[#allocation2 + $0x8] sm:$0xf]
    %v31 = vld [vmem:[#allocation2 + $0xc] sm:$0xf]
    %v32 = vld [vmem:[#allocation2 + $0x10] sm:$0xf]
    %v33 = vld [vmem:[#allocation2 + $0x14] sm:$0xf]
    %v34 = vld [vmem:[#allocation2 + $0x18] sm:$0xf]
    %v35 = vld [vmem:[#allocation2 + $0x1c] sm:$0xf]
    %v36 = vld [vmem:[#allocation2 + $0x20] sm:$0xf]
    %v37 = vld [vmem:[#allocation2 + $0x24] sm:$0xf]
    %v38 = vld [vmem:[#allocation2 + $0x28] sm:$0xf]
    %v39 = vld [vmem:[#allocation2 + $0x2c] sm:$0xf]
    %v40 = vld [vmem:[#allocation2 + $0x30] sm:$0xf]
    %v41 = vld [vmem:[#allocation2 + $0x34] sm:$0xf]
    %v42 = vld [vmem:[#allocation2 + $0x38] sm:$0xf]
    %v43 = vld [vmem:[#allocation2 + $0x3c] sm:$0xf]
    %v46 = vunpack.c.l.b16 %v26
    %v47 = vunpack.c.l.b16 %v27
    %v48 = vpack.c.b16 %v47, %v46
    %v66 = vunpack.c.l.b16 %v28
    %v67 = vunpack.c.l.b16 %v29
    %v68 = vunpack.c.l.b16 %v30
    %v69 = vunpack.c.l.b16 %v31
    %v70 = vunpack.c.l.b16 %v32
    %v71 = vunpack.c.l.b16 %v33
    %v72 = vunpack.c.l.b16 %v34
    %v73 = vunpack.c.l.b16 %v35
    %v74 = vunpack.c.l.b16 %v36
    %v75 = vunpack.c.l.b16 %v37
    %v76 = vunpack.c.l.b16 %v38
    %v77 = vunpack.c.l.b16 %v39
    %v78 = vunpack.c.l.b16 %v40
    %v79 = vunpack.c.l.b16 %v41
    %v80 = vunpack.c.l.b16 %v42
    %v81 = vunpack.c.l.b16 %v43
    %v82 = vpack.c.b16 %v67, %v66
    %v83 = vpack.c.b16 %v69, %v68
    %v84 = vpack.c.b16 %v71, %v70
    %v85 = vpack.c.b16 %v73, %v72
    %v86 = vpack.c.b16 %v75, %v74
    %v87 = vpack.c.b16 %v77, %v76
    %v88 = vpack.c.b16 %v79, %v78
    %v89 = vpack.c.b16 %v81, %v80
    %98 = vmatprep.subr.bf16.mxu0 0
    %99 = vmatpush1.bf16.msra.mxu0 %v89
    %100 = vmatprep.subr.bf16.mxu0 0
    %101 = vmatpush1.bf16.msra.mxu0 %v88
    %102 = vmatprep.subr.bf16.mxu0 0
    %103 = vmatpush1.bf16.msra.mxu0 %v87
    %104 = vmatprep.subr.bf16.mxu0 0
    %105 = vmatpush1.bf16.msra.mxu0 %v86
    %106 = vmatprep.subr.bf16.mxu0 0
    %107 = vmatpush1.bf16.msra.mxu0 %v85
    %108 = vmatprep.subr.bf16.mxu0 0
    %109 = vmatpush1.bf16.msra.mxu0 %v84
    %110 = vmatprep.subr.bf16.mxu0 0
    %111 = vmatpush1.bf16.msra.mxu0 %v83
    %112 = vmatprep.subr.bf16.mxu0 0
    %113 = vmatpush1.bf16.msra.mxu0 %v82
    %114 = vmatprep.subr.bf16.mxu0 0
    %115 = vmatpush2.bf16.msra.mxu0 0
    %116 = vmatprep.subr.bf16.mxu0 0
    %117 = vmatpush2.bf16.msra.mxu0 0
    %118 = vmatprep.subr.bf16.mxu0 0
    %119 = vmatpush2.bf16.msra.mxu0 0
    %120 = vmatprep.subr.bf16.mxu0 0
    %121 = vmatpush2.bf16.msra.mxu0 0
    %122 = vmatprep.subr.bf16.mxu0 0
    %123 = vmatpush2.bf16.msra.mxu0 0
    %124 = vmatprep.subr.bf16.mxu0 0
    %125 = vmatpush2.bf16.msra.mxu0 0
    %126 = vmatprep.subr.bf16.mxu0 0
    %127 = vmatpush2.bf16.msra.mxu0 0
    %128 = vmatprep.subr.bf16.mxu0 0
    %129 = vmatpush2.bf16.msra.mxu0 0
    %130 = vmatprep.mubr.bf16.mxu0 0
    %131 = vmatmul.mubr.bf16.gmra.mxu0 %v48
    %v132 = vpop.f32.mrf.mxu0
    %v133 = vadd.f32 0.0, %v132
    %v134 = vpop.f32.mrf.mxu0
    %v135 = vpop.f32.mrf.mxu0
    %v136 = vadd.f32 0.0, %v135
    %v137 = vpop.f32.mrf.mxu0
    %138 = vdwg.mxu0
    %v139 = vmax.f32 %v133, 0.0
    %v140 = vmax.f32 %v136, 0.0
    %v141 = vpack.c.bf16 %v140, %v139
    %v142 = vld [vmem:[#allocation2 + $0x40] sm:$0xf]
    %v143 = vld [vmem:[#allocation2 + $0x44] sm:$0xf]
    %v144 = vld [vmem:[#allocation2 + $0x48] sm:$0xf]
    %v145 = vld [vmem:[#allocation2 + $0x4c] sm:$0xf]
    %v146 = vld [vmem:[#allocation2 + $0x50] sm:$0xf]
    %v147 = vld [vmem:[#allocation2 + $0x54] sm:$0xf]
    %v148 = vld [vmem:[#allocation2 + $0x58] sm:$0xf]
    %v149 = vld [vmem:[#allocation2 + $0x5c] sm:$0xf]
    %v150 = vld [vmem:[#allocation2 + $0x60] sm:$0xf]
    %v151 = vld [vmem:[#allocation2 + $0x64] sm:$0xf]
    %v152 = vld [vmem:[#allocation2 + $0x68] sm:$0xf]
    %v153 = vld [vmem:[#allocation2 + $0x6c] sm:$0xf]
    %v154 = vld [vmem:[#allocation2 + $0x70] sm:$0xf]
    %v155 = vld [vmem:[#allocation2 + $0x74] sm:$0xf]
    %v156 = vld [vmem:[#allocation2 + $0x78] sm:$0xf]
    %v157 = vld [vmem:[#allocation2 + $0x7c] sm:$0xf]
    %v174 = vunpack.c.l.b16 %v142
    %v175 = vunpack.c.l.b16 %v143
    %v176 = vunpack.c.l.b16 %v144
    %v177 = vunpack.c.l.b16 %v145
    %v178 = vunpack.c.l.b16 %v146
    %v179 = vunpack.c.l.b16 %v147
    %v180 = vunpack.c.l.b16 %v148
    %v181 = vunpack.c.l.b16 %v149
    %v182 = vunpack.c.l.b16 %v150
    %v183 = vunpack.c.l.b16 %v151
    %v184 = vunpack.c.l.b16 %v152
    %v185 = vunpack.c.l.b16 %v153
    %v186 = vunpack.c.l.b16 %v154
    %v187 = vunpack.c.l.b16 %v155
    %v188 = vunpack.c.l.b16 %v156
    %v189 = vunpack.c.l.b16 %v157
    %v190 = vpack.c.b16 %v175, %v174
    %v191 = vpack.c.b16 %v177, %v176
    %v192 = vpack.c.b16 %v179, %v178
    %v193 = vpack.c.b16 %v181, %v180
    %v194 = vpack.c.b16 %v183, %v182
    %v195 = vpack.c.b16 %v185, %v184
    %v196 = vpack.c.b16 %v187, %v186
    %v197 = vpack.c.b16 %v189, %v188
    %206 = vmatprep.subr.bf16.mxu0 0
    %207 = vmatpush1.bf16.msra.mxu0 %v197
    %208 = vmatprep.subr.bf16.mxu0 0
    %209 = vmatpush1.bf16.msra.mxu0 %v196
    %210 = vmatprep.subr.bf16.mxu0 0
    %211 = vmatpush1.bf16.msra.mxu0 %v195
    %212 = vmatprep.subr.bf16.mxu0 0
    %213 = vmatpush1.bf16.msra.mxu0 %v194
    %214 = vmatprep.subr.bf16.mxu0 0
    %215 = vmatpush1.bf16.msra.mxu0 %v193
    %216 = vmatprep.subr.bf16.mxu0 0
    %217 = vmatpush1.bf16.msra.mxu0 %v192
    %218 = vmatprep.subr.bf16.mxu0 0
    %219 = vmatpush1.bf16.msra.mxu0 %v191
    %220 = vmatprep.subr.bf16.mxu0 0
    %221 = vmatpush1.bf16.msra.mxu0 %v190
    %222 = vmatprep.subr.bf16.mxu0 0
    %223 = vmatpush2.bf16.msra.mxu0 0
    %224 = vmatprep.subr.bf16.mxu0 0
    %225 = vmatpush2.bf16.msra.mxu0 0
    %226 = vmatprep.subr.bf16.mxu0 0
    %227 = vmatpush2.bf16.msra.mxu0 0
    %228 = vmatprep.subr.bf16.mxu0 0
    %229 = vmatpush2.bf16.msra.mxu0 0
    %230 = vmatprep.subr.bf16.mxu0 0
    %231 = vmatpush2.bf16.msra.mxu0 0
    %232 = vmatprep.subr.bf16.mxu0 0
    %233 = vmatpush2.bf16.msra.mxu0 0
    %234 = vmatprep.subr.bf16.mxu0 0
    %235 = vmatpush2.bf16.msra.mxu0 0
    %236 = vmatprep.subr.bf16.mxu0 0
    %237 = vmatpush2.bf16.msra.mxu0 0
    %238 = vmatprep.mubr.bf16.mxu0 0
    %239 = vmatmul.mubr.bf16.gmra.mxu0 %v141
    %v240 = vpop.f32.mrf.mxu0
    %v241 = vadd.f32 0.0, %v240
    %v242 = vpop.f32.mrf.mxu0
    %v243 = vpop.f32.mrf.mxu0
    %v244 = vadd.f32 0.0, %v243
    %v245 = vpop.f32.mrf.mxu0
    %246 = vdwg.mxu0
    %v247 = vmax.f32 %v241, 0.0
    %v248 = vmax.f32 %v244, 0.0
    %v249 = vpack.c.bf16 %v248, %v247
    %v250 = vld [vmem:[#allocation2 + $0x80] sm:$0xf]
    %v251 = vld [vmem:[#allocation2 + $0x84] sm:$0xf]
    %v252 = vld [vmem:[#allocation2 + $0x88] sm:$0xf]
    %v253 = vld [vmem:[#allocation2 + $0x8c] sm:$0xf]
    %v254 = vld [vmem:[#allocation2 + $0x90] sm:$0xf]
    %v255 = vld [vmem:[#allocation2 + $0x94] sm:$0xf]
    %v256 = vld [vmem:[#allocation2 + $0x98] sm:$0xf]
    %v257 = vld [vmem:[#allocation2 + $0x9c] sm:$0xf]
    %v258 = vld [vmem:[#allocation2 + $0xa0] sm:$0xf]
    %v259 = vld [vmem:[#allocation2 + $0xa4] sm:$0xf]
    %v260 = vld [vmem:[#allocation2 + $0xa8] sm:$0xf]
    %v261 = vld [vmem:[#allocation2 + $0xac] sm:$0xf]
    %v262 = vld [vmem:[#allocation2 + $0xb0] sm:$0xf]
    %v263 = vld [vmem:[#allocation2 + $0xb4] sm:$0xf]
    %v264 = vld [vmem:[#allocation2 + $0xb8] sm:$0xf]
    %v265 = vld [vmem:[#allocation2 + $0xbc] sm:$0xf]
    %v266 = vld [vmem:[#allocation2 + $0xc0] sm:$0x1]
    %v267 = vunpack.c.l.bf16 %v266
    %v268 = vlaneseq
    %v269 = vshrl.u32 %v268, 7
    %v270 = vsub.s32 0, %v269
    %v271 = vrot.slane %v267, %v270
    %v288 = vunpack.c.l.b16 %v250
    %v289 = vunpack.c.l.b16 %v251
    %v290 = vunpack.c.l.b16 %v252
    %v291 = vunpack.c.l.b16 %v253
    %v292 = vunpack.c.l.b16 %v254
    %v293 = vunpack.c.l.b16 %v255
    %v294 = vunpack.c.l.b16 %v256
    %v295 = vunpack.c.l.b16 %v257
    %v296 = vunpack.c.l.b16 %v258
    %v297 = vunpack.c.l.b16 %v259
    %v298 = vunpack.c.l.b16 %v260
    %v299 = vunpack.c.l.b16 %v261
    %v300 = vunpack.c.l.b16 %v262
    %v301 = vunpack.c.l.b16 %v263
    %v302 = vunpack.c.l.b16 %v264
    %v303 = vunpack.c.l.b16 %v265
    %v304 = vpack.c.b16 %v289, %v288
    %v305 = vpack.c.b16 %v291, %v290
    %v306 = vpack.c.b16 %v293, %v292
    %v307 = vpack.c.b16 %v295, %v294
    %v308 = vpack.c.b16 %v297, %v296
    %v309 = vpack.c.b16 %v299, %v298
    %v310 = vpack.c.b16 %v301, %v300
    %v311 = vpack.c.b16 %v303, %v302
    %320 = vmatprep.subr.bf16.mxu0 0
    %321 = vmatpush1.bf16.msra.mxu0 %v311
    %322 = vmatprep.subr.bf16.mxu0 0
    %323 = vmatpush1.bf16.msra.mxu0 %v310
    %324 = vmatprep.subr.bf16.mxu0 0
    %325 = vmatpush1.bf16.msra.mxu0 %v309
    %326 = vmatprep.subr.bf16.mxu0 0
    %327 = vmatpush1.bf16.msra.mxu0 %v308
    %328 = vmatprep.subr.bf16.mxu0 0
    %329 = vmatpush1.bf16.msra.mxu0 %v307
    %330 = vmatprep.subr.bf16.mxu0 0
    %331 = vmatpush1.bf16.msra.mxu0 %v306
    %332 = vmatprep.subr.bf16.mxu0 0
    %333 = vmatpush1.bf16.msra.mxu0 %v305
    %334 = vmatprep.subr.bf16.mxu0 0
    %335 = vmatpush1.bf16.msra.mxu0 %v304
    %336 = vmatprep.subr.bf16.mxu0 0
    %337 = vmatpush2.bf16.msra.mxu0 0
    %338 = vmatprep.subr.bf16.mxu0 0
    %339 = vmatpush2.bf16.msra.mxu0 0
    %340 = vmatprep.subr.bf16.mxu0 0
    %341 = vmatpush2.bf16.msra.mxu0 0
    %342 = vmatprep.subr.bf16.mxu0 0
    %343 = vmatpush2.bf16.msra.mxu0 0
    %344 = vmatprep.subr.bf16.mxu0 0
    %345 = vmatpush2.bf16.msra.mxu0 0
    %346 = vmatprep.subr.bf16.mxu0 0
    %347 = vmatpush2.bf16.msra.mxu0 0
    %348 = vmatprep.subr.bf16.mxu0 0
    %349 = vmatpush2.bf16.msra.mxu0 0
    %350 = vmatprep.subr.bf16.mxu0 0
    %351 = vmatpush2.bf16.msra.mxu0 0
    %352 = vmatprep.mubr.bf16.mxu0 0
    %353 = vmatmul.mubr.bf16.gmra.mxu0 %v249
    %v354 = vpop.f32.mrf.mxu0
    %v355 = vadd.f32 %v271, %v354
    %v356 = vpop.f32.mrf.mxu0
    %v357 = vpop.f32.mrf.mxu0
    %v358 = vadd.f32 %v271, %v357
    %v359 = vpop.f32.mrf.mxu0
    %360 = vdwg.mxu0
    %361 = vst [vmem:[%s2] sm:$0xff] %v355
    %362 = vst [vmem:[%s2 + $0x8] sm:$0xff] %v358
    // Predicated region
    $region14: #{_forward_batch.1} parent=1 // pred_check
      _
    $region15: #{_forward_batch.1} parent=1 // pred_check_branch
      %364 = sbr.rel (0) target = $region17
    $region16: #{_forward_batch.1} parent=1 // pred_region
      _
    $region17: #{_forward_batch.1} parent=1 // pred_fallthru
      _
    // Predicated region
    $region18: #{_forward_batch.1} parent=1 // pred_check
      _
    $region19: #{_forward_batch.1} parent=1 // pred_check_branch
      %366 = sbr.rel (0) target = $region21
    $region20: #{_forward_batch.1} parent=1 // pred_region
      _
    $region21: #{_forward_batch.1} parent=1 // pred_fallthru
      _
    %367 = vsyncpa [#allocation3], 1

</llo_original>
